<compile_context>
chip_gen: v7x
topology: tpu7x:2x2x1
jax: 0.10.0
libtpu: 0.0.40
codegen_flags: <defaults>
</compile_context>

<pallas_src>
import jax
import jax.numpy as jnp
from jax import lax
from jax.experimental import pallas as pl
from jax.experimental.pallas import tpu as pltpu

C = 1              # unused in forward (kept for parity with the PyTorch module)
LAMBDA_U = 0.01

ROW_BLOCK = 4096       # rays per grid step, full-loss path (multiple of 128)
MSE_ROW_BLOCK = 4096   # rays per grid step, MSE-only fallback (multiple of 8)
NUM_PARTIALS = 2       # leading "parallel" axis -> both TensorCores on v7x


def _round_up(x, m):
    return ((x + m - 1) // m) * m


# ----------------------------------------------------------------------------
# Full loss path: likelihood + regular loss
# ----------------------------------------------------------------------------
def _make_full_loss_kernel(n_rays, n_samples, nc, rb, steps_per_slot):
    inv_mse_cnt = 1.0 / float(nc * n_rays)
    inv_rays = 1.0 / float(n_rays)
    inv_sigma_cnt = 1.0 / float(n_rays * n_samples)

    def kernel(pred_ref, y_ref, beta_ref, sigma_ref, lik_ref, reg_ref,
               acc_sq_ref, acc_log_ref, acc_sig_ref):
        i = pl.program_id(1)

        @pl.when(i == 0)
        def _init():
            acc_sq_ref[...] = jnp.zeros_like(acc_sq_ref)
            acc_log_ref[...] = jnp.zeros_like(acc_log_ref)
            acc_sig_ref[...] = jnp.zeros_like(acc_sig_ref)

        pred = pred_ref[...].astype(jnp.float32)      # (nc, rb)  lane-dense
        y = y_ref[...].astype(jnp.float32)            # (nc, rb)
        beta = beta_ref[...].astype(jnp.float32)      # (1, rb)

        inv_beta = pl.reciprocal(beta, approx=False)  # exact 1/beta (tiny stream)
        d = (pred - y) * inv_beta                     # sublane-broadcast (1,rb)
        acc_sq_ref[...] += d * d                      # plain VALU accumulation
        acc_log_ref[...] += jnp.log(beta)             # EUP slot

        sigma = sigma_ref[...].astype(jnp.float32)    # (sig_rows, n_samples)
        sig_rows = acc_sig_ref.shape[0]
        g = pl.program_id(0) * steps_per_slot + i     # global ray-block index
        row_start = g * rb
        is_full = row_start + sig_rows <= n_rays

        @pl.when(is_full)
        def _acc_full():
            acc_sig_ref[...] += sigma

        @pl.when(jnp.logical_not(is_full))
        def _acc_ragged():
            # Only the ragged / out-of-range blocks pay for the mask.
            rows = lax.broadcasted_iota(jnp.int32, acc_sig_ref.shape, 0) + row_start
            acc_sig_ref[...] += jnp.where(rows < n_rays, sigma, 0.0)

        @pl.when(i == pl.num_programs(1) - 1)
        def _finalize():
            mse = jnp.sum(acc_sq_ref[...]) * inv_mse_cnt
            lik = 0.5 * mse + jnp.sum(acc_log_ref[...]) * inv_rays
            reg = LAMBDA_U * jnp.sum(acc_sig_ref[...]) * inv_sigma_cnt
            lik_ref[...] = jnp.full((1, 1, 1), lik, jnp.float32)
            reg_ref[...] = jnp.full((1, 1, 1), reg, jnp.float32)

    return kernel


def _full_loss(pred_c, y_c, beta, transient_sigma):
    n_rays, nc = pred_c.shape
    n_samples = transient_sigma.shape[1]

    # Block size: keep the (double-buffered) sigma tile around <= 2 MiB.
    bytes_per_ray = max(n_samples, 1) * 4
    rb_cap = max(128, ((2 * 1024 * 1024) // bytes_per_ray) // 128 * 128)
    rb = min(ROW_BLOCK, rb_cap, _round_up(n_rays, 128))

    n_blocks = pl.cdiv(n_rays, rb)
    steps_per_slot = pl.cdiv(n_blocks, NUM_PARTIALS)
    n_pad = NUM_PARTIALS * steps_per_slot * rb
    pad_r = n_pad - n_rays

    # Sigma is consumed in place; only the small pred/y/beta streams get a
    # lane-dense transpose + neutral padding (pred = y = 0 -> diff 0;
    # beta = 1 -> log(1) = 0).
    pred_t = jnp.pad(pred_c.T, ((0, 0), (0, pad_r)))
    y_t = jnp.pad(y_c.T, ((0, 0), (0, pad_r)))
    beta_t = jnp.pad(beta.reshape(1, -1), ((0, 0), (0, pad_r)), constant_values=1.0)

    # If everything fits in one ray block, use the full sigma extent so the
    # block never exceeds the array; otherwise the last block is ragged and is
    # masked in-kernel.
    sig_rows = n_rays if n_blocks == 1 else rb

    kernel = _make_full_loss_kernel(n_rays, n_samples, nc, rb, steps_per_slot)
    partial_shape = jax.ShapeDtypeStruct((NUM_PARTIALS, 1, 1), jnp.float32)
    partial_spec = pl.BlockSpec((1, 1, 1), lambda c, i: (c, 0, 0))

    def ray_block(c, i):
        return (0, c * steps_per_slot + i)

    def sigma_block(c, i):
        # Clamp: fully out-of-range slots re-read the last valid block and are
        # masked to zero contribution inside the kernel.
        return (jnp.minimum(c * steps_per_slot + i, n_blocks - 1), 0)

    bytes_accessed = int(pred_t.size * pred_t.dtype.itemsize
                         + y_t.size * y_t.dtype.itemsize
                         + beta_t.size * beta_t.dtype.itemsize
                         + transient_sigma.size * transient_sigma.dtype.itemsize)
    cost = pl.CostEstimate(
        flops=int(5 * pred_t.size + 2 * transient_sigma.size),
        transcendentals=int(2 * n_pad),
        bytes_accessed=bytes_accessed)

    lik_p, reg_p = pl.pallas_call(
        kernel,
        out_shape=(partial_shape, partial_shape),
        grid_spec=pltpu.PrefetchScalarGridSpec(
            num_scalar_prefetch=0,
            grid=(NUM_PARTIALS, steps_per_slot),
            in_specs=[
                pl.BlockSpec((nc, rb), ray_block),
                pl.BlockSpec((nc, rb), ray_block),
                pl.BlockSpec((1, rb), ray_block),
                pl.BlockSpec((sig_rows, n_samples), sigma_block),
            ],
            out_specs=(partial_spec, partial_spec),
            scratch_shapes=[
                pltpu.VMEM((nc, rb), jnp.float32),          # sum ((p-y)/beta)^2
                pltpu.VMEM((1, rb), jnp.float32),           # sum log(beta)
                pltpu.VMEM((sig_rows, n_samples), jnp.float32),  # sum sigma
            ],
        ),
        compiler_params=pltpu.CompilerParams(
            dimension_semantics=("parallel", "arbitrary"),
            vmem_limit_bytes=32 * 1024 * 1024),
        cost_estimate=cost,
    )(pred_t, y_t, beta_t, transient_sigma)

    # Per-slot (per-core) partials are summed here; all scale factors are
    # global so summation is exact w.r.t. the loss definition.
    return jnp.sum(lik_p), jnp.sum(reg_p)


# ----------------------------------------------------------------------------
# Fallback path: plain MSE(pred_c, y_c)
# ----------------------------------------------------------------------------
def _make_mse_kernel(n_rows, nc, rb):
    inv_cnt = 1.0 / float(n_rows * nc)

    def kernel(p_ref, y_ref, out_ref, acc_ref):
        i = pl.program_id(0)

        @pl.when(i == 0)
        def _init():
            acc_ref[...] = jnp.zeros_like(acc_ref)

        d = p_ref[...].astype(jnp.float32) - y_ref[...].astype(jnp.float32)
        d2 = d * d
        row_start = i * rb
        is_full = row_start + rb <= n_rows

        @pl.when(is_full)
        def _acc_full():
            acc_ref[...] += d2

        @pl.when(jnp.logical_not(is_full))
        def _acc_ragged():
            rows = lax.broadcasted_iota(jnp.int32, acc_ref.shape, 0) + row_start
            acc_ref[...] += jnp.where(rows < n_rows, d2, 0.0)

        @pl.when(i == pl.num_programs(0) - 1)
        def _finalize():
            out_ref[0, 0] = jnp.sum(acc_ref[...]) * inv_cnt

    return kernel


def _mse_only(pred_c, y_c):
    # TODO(synk): the v7x dual-core 2-slot "parallel" split used in the full
    # path could be applied here too; fallback path kept single-axis for now.
    n_rows, nc = pred_c.shape
    rb = min(MSE_ROW_BLOCK, _round_up(n_rows, 8))
    num_steps = pl.cdiv(n_rows, rb)
    if num_steps == 1:
        rb = n_rows  # full extent; avoids an over-sized block

    out = pl.pallas_call(
        _make_mse_kernel(n_rows, nc, rb),
        out_shape=jax.ShapeDtypeStruct((1, 1), jnp.float32),
        grid_spec=pltpu.PrefetchScalarGridSpec(
            num_scalar_prefetch=0,
            grid=(num_steps,),
            in_specs=[pl.BlockSpec((rb, nc), lambda i: (i, 0)),
                      pl.BlockSpec((rb, nc), lambda i: (i, 0))],
            out_specs=pl.BlockSpec(memory_space=pltpu.SMEM),
            scratch_shapes=[pltpu.VMEM((rb, nc), jnp.float32)],
        ),
        compiler_params=pltpu.CompilerParams(
            dimension_semantics=("arbitrary",),
            vmem_limit_bytes=32 * 1024 * 1024),
        cost_estimate=pl.CostEstimate(
            flops=int(3 * n_rows * nc),
            transcendentals=0,
            bytes_accessed=int(2 * n_rows * nc * pred_c.dtype.itemsize)),
    )(pred_c, y_c)
    return out[0, 0]


# ----------------------------------------------------------------------------
# Public wrapper (mirrors LikelihoodLoss.forward)
# ----------------------------------------------------------------------------
@jax.jit
def likelihood_loss(pred_c, y_c, beta=None, transient_sigma=None):
    """Returns (likelihood_loss, regular_loss); (mse, None) if beta/sigma are None."""
    if beta is None and transient_sigma is None:
        return _mse_only(pred_c, y_c), None
    return _full_loss(pred_c, y_c, beta, transient_sigma)


if __name__ == "__main__":
    key = jax.random.PRNGKey(0)

    def run_case(n_rays, n_samples, k):
        k1, k2, k3, k4 = jax.random.split(k, 4)
        pred_c = jax.random.uniform(k1, (n_rays, 3), jnp.float32)
        y_c = jax.random.uniform(k2, (n_rays, 3), jnp.float32)
        beta = jax.random.uniform(k3, (n_rays, 1), jnp.float32,
                                  minval=0.1, maxval=1.0)
        transient_sigma = jax.random.uniform(k4, (n_rays, n_samples), jnp.float32)

        lik, reg = likelihood_loss(pred_c, y_c, beta, transient_sigma)
        jax.block_until_ready((lik, reg))

        # Pure-JAX reference (same semantics as the PyTorch module).
        ref_mse = jnp.mean(((pred_c / beta) - (y_c / beta)) ** 2)
        ref_lik = ref_mse / 2.0 + jnp.mean(jnp.log(beta))
        ref_reg = LAMBDA_U * jnp.mean(transient_sigma)
        assert jnp.allclose(lik, ref_lik, rtol=1e-4, atol=1e-5), (lik, ref_lik)
        assert jnp.allclose(reg, ref_reg, rtol=1e-4, atol=1e-6), (reg, ref_reg)

        # Fallback branch (beta / transient_sigma are None) -> (plain MSE, None).
        mse_only, none_reg = likelihood_loss(pred_c, y_c, None, None)
        jax.block_until_ready(mse_only)
        ref_mse_only = jnp.mean((pred_c - y_c) ** 2)
        assert none_reg is None
        assert jnp.allclose(mse_only, ref_mse_only, rtol=1e-4, atol=1e-6), (
            mse_only, ref_mse_only)

    k_a, k_b = jax.random.split(key)
    run_case(128, 64, k_a)   # block-aligned case
    run_case(203, 48, k_b)   # ragged case: rays not a multiple of 8/128

    print("KERNEL_OK")
</pallas_src>

<mosaic_0001>
module attributes {stable_mosaic.version = 11 : i64} {
  func.func @kernel(%arg0: i32, %arg1: i32, %arg2: memref<3x128xf32, #tpu.memory_space<vmem>>, %arg3: memref<3x128xf32, #tpu.memory_space<vmem>>, %arg4: memref<1x128xf32, #tpu.memory_space<vmem>>, %arg5: memref<128x64xf32, #tpu.memory_space<vmem>>, %arg6: memref<1x1x1xf32, #tpu.memory_space<vmem>>, %arg7: memref<1x1x1xf32, #tpu.memory_space<vmem>>, %arg8: memref<3x128xf32, #tpu.memory_space<vmem>>, %arg9: memref<1x128xf32, #tpu.memory_space<vmem>>, %arg10: memref<128x64xf32, #tpu.memory_space<vmem>>) attributes {dimension_semantics = [#tpu.dimension_semantics<parallel>, #tpu.dimension_semantics<arbitrary>], iteration_bounds = array<i64: 2, 1>, scalar_prefetch = 0 : i64, scratch_operands = 3 : i64, tpu.core_type = #tpu.core_type<tc>, window_params = [{transform_indices = @transform_0, window_bounds = array<i64: 3, 128>}, {transform_indices = @transform_1, window_bounds = array<i64: 3, 128>}, {transform_indices = @transform_2, window_bounds = array<i64: 1, 128>}, {transform_indices = @transform_3, window_bounds = array<i64: 128, 64>}, {transform_indices = @transform_4, window_bounds = array<i64: 1, 1, 1>}, {transform_indices = @transform_5, window_bounds = array<i64: 1, 1, 1>}]} {
    %c0_i32 = arith.constant 0 : i32
    %0 = arith.cmpi eq, %arg1, %c0_i32 : i32
    %1 = arith.extui %0 : i1 to i32
    %c0_i32_0 = arith.constant 0 : i32
    %2 = arith.cmpi ne, %1, %c0_i32_0 : i32
    scf.if %2 {
      %cst = arith.constant 0.000000e+00 : f32
      %32 = vector.broadcast %cst : f32 to vector<3x128xf32>
      %c0_22 = arith.constant 0 : index
      %c0_23 = arith.constant 0 : index
      %33 = vector.load %arg8[%c0_22, %c0_23] : memref<3x128xf32, #tpu.memory_space<vmem>>, vector<3x128xf32>
      tpu.vector_store %arg8[%c0_22, %c0_23], %32 {strides = array<i32>} : memref<3x128xf32, #tpu.memory_space<vmem>>, vector<3x128xf32>,
      %cst_24 = arith.constant 0.000000e+00 : f32
      %34 = vector.broadcast %cst_24 : f32 to vector<1x128xf32>
      %c0_25 = arith.constant 0 : index
      %c0_26 = arith.constant 0 : index
      %35 = vector.load %arg9[%c0_25, %c0_26] : memref<1x128xf32, #tpu.memory_space<vmem>>, vector<1x128xf32>
      tpu.vector_store %arg9[%c0_25, %c0_26], %34 {strides = array<i32>} : memref<1x128xf32, #tpu.memory_space<vmem>>, vector<1x128xf32>,
      %cst_27 = arith.constant 0.000000e+00 : f32
      %36 = vector.broadcast %cst_27 : f32 to vector<128x64xf32>
      %c0_28 = arith.constant 0 : index
      %c0_29 = arith.constant 0 : index
      %37 = vector.load %arg10[%c0_28, %c0_29] : memref<128x64xf32, #tpu.memory_space<vmem>>, vector<128x64xf32>
      tpu.vector_store %arg10[%c0_28, %c0_29], %36 {strides = array<i32>} : memref<128x64xf32, #tpu.memory_space<vmem>>, vector<128x64xf32>,
    } else {
    }
    %c0 = arith.constant 0 : index
    %c0_1 = arith.constant 0 : index
    %3 = vector.load %arg2[%c0, %c0_1] : memref<3x128xf32, #tpu.memory_space<vmem>>, vector<3x128xf32>
    %c0_2 = arith.constant 0 : index
    %c0_3 = arith.constant 0 : index
    %4 = vector.load %arg3[%c0_2, %c0_3] : memref<3x128xf32, #tpu.memory_space<vmem>>, vector<3x128xf32>
    %c0_4 = arith.constant 0 : index
    %c0_5 = arith.constant 0 : index
    %5 = vector.load %arg4[%c0_4, %c0_5] : memref<1x128xf32, #tpu.memory_space<vmem>>, vector<1x128xf32>
    %6 = tpu.reciprocal %5 : vector<1x128xf32> -> vector<1x128xf32>
    %7 = arith.subf %3, %4 : vector<3x128xf32>
    %8 = vector.broadcast %6 : vector<1x128xf32> to vector<3x128xf32>
    %9 = arith.mulf %7, %8 : vector<3x128xf32>
    %c0_6 = arith.constant 0 : index
    %c0_7 = arith.constant 0 : index
    %10 = vector.load %arg8[%c0_6, %c0_7] : memref<3x128xf32, #tpu.memory_space<vmem>>, vector<3x128xf32>
    %11 = arith.mulf %9, %9 : vector<3x128xf32>
    %12 = arith.addf %10, %11 : vector<3x128xf32>
    %c0_8 = arith.constant 0 : index
    %c0_9 = arith.constant 0 : index
    %13 = vector.load %arg8[%c0_8, %c0_9] : memref<3x128xf32, #tpu.memory_space<vmem>>, vector<3x128xf32>
    tpu.vector_store %arg8[%c0_8, %c0_9], %12 {strides = array<i32>} : memref<3x128xf32, #tpu.memory_space<vmem>>, vector<3x128xf32>,
    %c0_10 = arith.constant 0 : index
    %c0_11 = arith.constant 0 : index
    %14 = vector.load %arg9[%c0_10, %c0_11] : memref<1x128xf32, #tpu.memory_space<vmem>>, vector<1x128xf32>
    %15 = math.log %5 : vector<1x128xf32>
    %16 = arith.addf %14, %15 : vector<1x128xf32>
    %c0_12 = arith.constant 0 : index
    %c0_13 = arith.constant 0 : index
    %17 = vector.load %arg9[%c0_12, %c0_13] : memref<1x128xf32, #tpu.memory_space<vmem>>, vector<1x128xf32>
    tpu.vector_store %arg9[%c0_12, %c0_13], %16 {strides = array<i32>} : memref<1x128xf32, #tpu.memory_space<vmem>>, vector<1x128xf32>,
    %c0_14 = arith.constant 0 : index
    %c0_15 = arith.constant 0 : index
    %18 = vector.load %arg5[%c0_14, %c0_15] : memref<128x64xf32, #tpu.memory_space<vmem>>, vector<128x64xf32>
    %c1_i32 = arith.constant 1 : i32
    %19 = arith.muli %arg0, %c1_i32 : i32
    %20 = arith.addi %19, %arg1 : i32
    %c128_i32 = arith.constant 128 : i32
    %21 = arith.muli %20, %c128_i32 : i32
    %c128_i32_16 = arith.constant 128 : i32
    %22 = arith.addi %21, %c128_i32_16 : i32
    %c128_i32_17 = arith.constant 128 : i32
    %23 = arith.cmpi sle, %22, %c128_i32_17 : i32
    %24 = arith.extui %23 : i1 to i32
    %c0_i32_18 = arith.constant 0 : i32
    %25 = arith.cmpi ne, %24, %c0_i32_18 : i32
    scf.if %25 {
      %c0_22 = arith.constant 0 : index
      %c0_23 = arith.constant 0 : index
      %32 = vector.load %arg10[%c0_22, %c0_23] : memref<128x64xf32, #tpu.memory_space<vmem>>, vector<128x64xf32>
      %33 = arith.addf %32, %18 : vector<128x64xf32>
      %c0_24 = arith.constant 0 : index
      %c0_25 = arith.constant 0 : index
      %34 = vector.load %arg10[%c0_24, %c0_25] : memref<128x64xf32, #tpu.memory_space<vmem>>, vector<128x64xf32>
      tpu.vector_store %arg10[%c0_24, %c0_25], %33 {strides = array<i32>} : memref<128x64xf32, #tpu.memory_space<vmem>>, vector<128x64xf32>,
    } else {
    }
    %true = arith.constant true
    %26 = arith.xori %23, %true : i1
    %27 = arith.extui %26 : i1 to i32
    %c0_i32_19 = arith.constant 0 : i32
    %28 = arith.cmpi ne, %27, %c0_i32_19 : i32
    scf.if %28 {
      %32 = tpu.iota {dimensions = array<i32: 0>} : vector<128x64xi32>
      %33 = vector.broadcast %21 : i32 to vector<128x64xi32>
      %34 = arith.addi %32, %33 : vector<128x64xi32>
      %c0_22 = arith.constant 0 : index
      %c0_23 = arith.constant 0 : index
      %35 = vector.load %arg10[%c0_22, %c0_23] : memref<128x64xf32, #tpu.memory_space<vmem>>, vector<128x64xf32>
      %c128_i32_24 = arith.constant 128 : i32
      %36 = vector.broadcast %c128_i32_24 : i32 to vector<128x64xi32>
      %37 = arith.cmpi slt, %34, %36 : vector<128x64xi32>
      %cst = arith.constant 0.000000e+00 : f32
      %38 = vector.broadcast %cst : f32 to vector<128x64xf32>
      %39 = arith.select %37, %18, %38 : vector<128x64xi1>, vector<128x64xf32>
      %40 = arith.addf %35, %39 : vector<128x64xf32>
      %c0_25 = arith.constant 0 : index
      %c0_26 = arith.constant 0 : index
      %41 = vector.load %arg10[%c0_25, %c0_26] : memref<128x64xf32, #tpu.memory_space<vmem>>, vector<128x64xf32>
      tpu.vector_store %arg10[%c0_25, %c0_26], %40 {strides = array<i32>} : memref<128x64xf32, #tpu.memory_space<vmem>>, vector<128x64xf32>,
    } else {
    }
    %c0_i32_20 = arith.constant 0 : i32
    %29 = arith.cmpi eq, %arg1, %c0_i32_20 : i32
    %30 = arith.extui %29 : i1 to i32
    %c0_i32_21 = arith.constant 0 : i32
    %31 = arith.cmpi ne, %30, %c0_i32_21 : i32
    scf.if %31 {
      %c0_22 = arith.constant 0 : index
      %c0_23 = arith.constant 0 : index
      %32 = vector.load %arg8[%c0_22, %c0_23] : memref<3x128xf32, #tpu.memory_space<vmem>>, vector<3x128xf32>
      %33 = vector.shape_cast %32 : vector<3x128xf32> to vector<1x3x128xf32>
      %cst = arith.constant dense<0.000000e+00> : vector<1xf32>
      %34 = vector.multi_reduction <add>, %33, %cst [1, 2] : vector<1x3x128xf32> to vector<1xf32>
      %35 = vector.shape_cast %34 : vector<1xf32> to vector<1x1x1xf32>
      %36 = vector.extract %35[0, 0, 0] : f32 from vector<1x1x1xf32>
      %cst_24 = arith.constant 0.00260416674 : f32
      %37 = arith.mulf %36, %cst_24 : f32
      %cst_25 = arith.constant 5.000000e-01 : f32
      %38 = arith.mulf %cst_25, %37 : f32
      %c0_26 = arith.constant 0 : index
      %c0_27 = arith.constant 0 : index
      %39 = vector.load %arg9[%c0_26, %c0_27] : memref<1x128xf32, #tpu.memory_space<vmem>>, vector<1x128xf32>
      %40 = vector.shape_cast %39 : vector<1x128xf32> to vector<1x1x128xf32>
      %cst_28 = arith.constant dense<0.000000e+00> : vector<1xf32>
      %41 = vector.multi_reduction <add>, %40, %cst_28 [1, 2] : vector<1x1x128xf32> to vector<1xf32>
      %42 = vector.shape_cast %41 : vector<1xf32> to vector<1x1x1xf32>
      %43 = vector.extract %42[0, 0, 0] : f32 from vector<1x1x1xf32>
      %cst_29 = arith.constant 7.812500e-03 : f32
      %44 = arith.mulf %43, %cst_29 : f32
      %45 = arith.addf %38, %44 : f32
      %c0_30 = arith.constant 0 : index
      %c0_31 = arith.constant 0 : index
      %46 = vector.load %arg10[%c0_30, %c0_31] : memref<128x64xf32, #tpu.memory_space<vmem>>, vector<128x64xf32>
      %47 = vector.shape_cast %46 : vector<128x64xf32> to vector<1x128x64xf32>
      %cst_32 = arith.constant dense<0.000000e+00> : vector<1xf32>
      %48 = vector.multi_reduction <add>, %47, %cst_32 [1, 2] : vector<1x128x64xf32> to vector<1xf32>
      %49 = vector.shape_cast %48 : vector<1xf32> to vector<1x1x1xf32>
      %50 = vector.extract %49[0, 0, 0] : f32 from vector<1x1x1xf32>
      %cst_33 = arith.constant 0.00999999977 : f32
      %51 = arith.mulf %cst_33, %50 : f32
      %cst_34 = arith.constant 1.22070313E-4 : f32
      %52 = arith.mulf %51, %cst_34 : f32
      %53 = vector.broadcast %45 : f32 to vector<1x1x1xf32>
      %c0_35 = arith.constant 0 : index
      %c0_36 = arith.constant 0 : index
      %c0_37 = arith.constant 0 : index
      %54 = vector.load %arg6[%c0_35, %c0_36, %c0_37] : memref<1x1x1xf32, #tpu.memory_space<vmem>>, vector<1x1x1xf32>
      tpu.vector_store %arg6[%c0_35, %c0_36, %c0_37], %53 {strides = array<i32>} : memref<1x1x1xf32, #tpu.memory_space<vmem>>, vector<1x1x1xf32>,
      %55 = vector.broadcast %52 : f32 to vector<1x1x1xf32>
      %c0_38 = arith.constant 0 : index
      %c0_39 = arith.constant 0 : index
      %c0_40 = arith.constant 0 : index
      %56 = vector.load %arg7[%c0_38, %c0_39, %c0_40] : memref<1x1x1xf32, #tpu.memory_space<vmem>>, vector<1x1x1xf32>
      tpu.vector_store %arg7[%c0_38, %c0_39, %c0_40], %55 {strides = array<i32>} : memref<1x1x1xf32, #tpu.memory_space<vmem>>, vector<1x1x1xf32>,
    } else {
    }
    return
  }
  func.func @transform_0(%arg0: i32, %arg1: i32) -> (i32, i32) {
    %c1_i32 = arith.constant 1 : i32
    %0 = arith.muli %arg0, %c1_i32 : i32
    %1 = arith.addi %0, %arg1 : i32
    %c0_i32 = arith.constant 0 : i32
    %c0_i32_0 = arith.constant 0 : i32
    return %c0_i32, %1 : i32, i32
  }
  func.func @transform_1(%arg0: i32, %arg1: i32) -> (i32, i32) {
    %c1_i32 = arith.constant 1 : i32
    %0 = arith.muli %arg0, %c1_i32 : i32
    %1 = arith.addi %0, %arg1 : i32
    %c0_i32 = arith.constant 0 : i32
    %c0_i32_0 = arith.constant 0 : i32
    return %c0_i32, %1 : i32, i32
  }
  func.func @transform_2(%arg0: i32, %arg1: i32) -> (i32, i32) {
    %c1_i32 = arith.constant 1 : i32
    %0 = arith.muli %arg0, %c1_i32 : i32
    %1 = arith.addi %0, %arg1 : i32
    %c0_i32 = arith.constant 0 : i32
    %c0_i32_0 = arith.constant 0 : i32
    return %c0_i32, %1 : i32, i32
  }
  func.func @transform_3(%arg0: i32, %arg1: i32) -> (i32, i32) {
    %c1_i32 = arith.constant 1 : i32
    %0 = arith.muli %arg0, %c1_i32 : i32
    %1 = arith.addi %0, %arg1 : i32
    %c0_i32 = arith.constant 0 : i32
    %2 = arith.minsi %1, %c0_i32 : i32
    %c0_i32_0 = arith.constant 0 : i32
    %c0_i32_1 = arith.constant 0 : i32
    return %2, %c0_i32_0 : i32, i32
  }
  func.func @transform_4(%arg0: i32, %arg1: i32) -> (i32, i32, i32) {
    %c0_i32 = arith.constant 0 : i32
    %c0_i32_0 = arith.constant 0 : i32
    %c0_i32_1 = arith.constant 0 : i32
    return %arg0, %c0_i32, %c0_i32_0 : i32, i32, i32
  }
  func.func @transform_5(%arg0: i32, %arg1: i32) -> (i32, i32, i32) {
    %c0_i32 = arith.constant 0 : i32
    %c0_i32_0 = arith.constant 0 : i32
    %c0_i32_1 = arith.constant 0 : i32
    return %arg0, %c0_i32, %c0_i32_0 : i32, i32, i32
  }
}

</mosaic_0001>

<llo_original>
// kernel: likelihood_loss.1
$region0: #{likelihood_loss.1}
  #allocation0 [shape = 'u32[]', space=smem, size = 0x4, offset = 0x4, fixed_abs, tag = 'smem constant byte address 0x4 - core index']
  #allocation1 [shape = 'u32[144,128]{1,0:T(1,128)}', space=vmem, size = 0x12000, scoped, tag = 'internal scratch']
  #allocation2 [shape = 'f32[3,128]{1,0:T(4,128)}', space=vmem, size = 0x800, scoped, tag = 'scratch operand']
  #allocation3 [shape = 'f32[1,128]{1,0:T(1,128)}', space=vmem, size = 0x200, scoped, tag = 'scratch operand']
  #allocation4 [shape = 'f32[128,64]{1,0:T(8,128)}', space=vmem, size = 0x10000, scoped, tag = 'scratch operand']
  %s0 = inlined_call_operand.vmem [shape: f32[3,256], index: 0, kind: input, shape index: {}]
  %s1 = inlined_call_operand.vmem [shape: f32[3,256], index: 1, kind: input, shape index: {}]
  %s2 = inlined_call_operand.vmem [shape: f32[1,256], index: 2, kind: input, shape index: {}]
  %s3 = inlined_call_operand.vmem [shape: f32[128,64], index: 3, kind: input, shape index: {}]
  %s4 = inlined_call_operand.vmem [shape: f32[2,1,1], index: 4, kind: output, shape index: {0}]
  %s5 = inlined_call_operand.vmem [shape: f32[2,1,1], index: 5, kind: output, shape index: {1}]
  %6 = xla_tuple %s4, %s5
  %s7 = sld [smem:[#allocation0]]
  $region73: #{likelihood_loss.1} parent=0
    _
  %s9 = ssub.s32 1, %s7
  %s10 = scalar_select 0, %s9, %s7
  loop: start=0, step=1, limit=4
  $region2: #{likelihood_loss.1} parent=0 // loop_pre_header
    _
  $region3: #{likelihood_loss.1} parent=0 // loop_header
    %s12 = sphi 0, %s16
    %p13 = scmp.ge.s32.totalorder %s12, 4
    %s19 = sphi 0, %s31
    %s20 = sphi 0, %s27
    %s21 = sphi 0, %s19
    %s22 = sphi 0, %s20
    %s23 = sphi 0, %s21
    %s24 = sphi 0, %s22
    %s36 = sphi 0, %s38
    %s39 = sphi 0, %s36
    %s40 = sphi 0, %s39
    %s56 = sphi 0, %s40
    %s64 = sphi 0, %s66
    %s67 = sphi 0, %s64
    %s68 = sphi 0, %s67
    %s84 = sphi 0, %s68
    %s92 = sphi 0, %s94
    %s95 = sphi 0, %s92
    %s96 = sphi 0, %s95
    %s112 = sphi 0, %s96
    %s124 = sphi 0, %s126
    %s127 = sphi 0, %s124
    %s128 = sphi 0, %s127
    %s144 = sphi 0, %s128
    %s150 = sphi 0, %s152
    %s153 = sphi 0, %s150
    %s154 = sphi 0, %s153
    %s170 = sphi 0, %s154
    %s176 = sphi 0, %s178
    %s179 = sphi 0, %s176
    %s180 = sphi 0, %s179
    %s196 = sphi 0, %s180
  $region4: #{likelihood_loss.1} parent=0 // loop_header_branch
    %15 = sbr.rel (%p13) target = $region8
  $region5: #{likelihood_loss.1} parent=0 // loop_body
    %s17 = ssub.s32 %s12, 1
    %s18 = ssub.s32 %s12, 2
    %s25 = sadd.s32 1, %s20
    %p26 = scmp.ge.s32.totalorder %s25, 1
    %s27 = scalar_select %p26, 0, %s25
    %s28 = sadd.s32 1, %s19
    %s29 = scalar_select %p26, %s28, %s19
    %p30 = scmp.ge.s32.totalorder %s29, 2
    %s31 = scalar_select %p30, 0, %s29
    %s32 = sadd.s32 %s19, %s20
    %s33 = sadd.s32 %s31, %s27
    %s34 = ssub.s32 %s32, %s33
    %p35 = scmp.eq.s32.totalorder %s34, 0
    %s37 = sadd.s32 %s36, 1
    %s38 = scalar_select %p35, %s36, %s37
    %p41 = pneg %p35
    %p42 = scmp.eq.s32.totalorder %s12, 1
    %p43 = por %p41, %p42
    %p44 = scmp.ne.s32.totalorder %s36, %s39
    %p45 = scmp.eq.s32.totalorder %s12, 0
    %p46 = por %p44, %p45
    %p47 = scmp.ne.s32.totalorder %s36, %s39
    %p48 = scmp.eq.s32.totalorder %s17, 1
    %p49 = por %p47, %p48
    %p50 = scmp.ne.s32.totalorder %s39, %s40
    %p51 = scmp.eq.s32.totalorder %s17, 0
    %p52 = por %p50, %p51
    %p53 = scmp.ne.s32.totalorder %s39, %s40
    %p54 = scmp.eq.s32.totalorder %s18, 1
    %p55 = por %p53, %p54
    %p57 = scmp.ne.s32.totalorder %s40, %s56
    %p58 = scmp.eq.s32.totalorder %s18, 0
    %p59 = por %p57, %p58
    %s60 = sadd.s32 %s19, %s20
    %s61 = sadd.s32 %s31, %s27
    %s62 = ssub.s32 %s60, %s61
    %p63 = scmp.eq.s32.totalorder %s62, 0
    %s65 = sadd.s32 %s64, 1
    %s66 = scalar_select %p63, %s64, %s65
    %p69 = pneg %p63
    %p70 = scmp.eq.s32.totalorder %s12, 1
    %p71 = por %p69, %p70
    %p72 = scmp.ne.s32.totalorder %s64, %s67
    %p73 = scmp.eq.s32.totalorder %s12, 0
    %p74 = por %p72, %p73
    %p75 = scmp.ne.s32.totalorder %s64, %s67
    %p76 = scmp.eq.s32.totalorder %s17, 1
    %p77 = por %p75, %p76
    %p78 = scmp.ne.s32.totalorder %s67, %s68
    %p79 = scmp.eq.s32.totalorder %s17, 0
    %p80 = por %p78, %p79
    %p81 = scmp.ne.s32.totalorder %s67, %s68
    %p82 = scmp.eq.s32.totalorder %s18, 1
    %p83 = por %p81, %p82
    %p85 = scmp.ne.s32.totalorder %s68, %s84
    %p86 = scmp.eq.s32.totalorder %s18, 0
    %p87 = por %p85, %p86
    %s88 = sadd.s32 %s19, %s20
    %s89 = sadd.s32 %s31, %s27
    %s90 = ssub.s32 %s88, %s89
    %p91 = scmp.eq.s32.totalorder %s90, 0
    %s93 = sadd.s32 %s92, 1
    %s94 = scalar_select %p91, %s92, %s93
    %p97 = pneg %p91
    %p98 = scmp.eq.s32.totalorder %s12, 1
    %p99 = por %p97, %p98
    %p100 = scmp.ne.s32.totalorder %s92, %s95
    %p101 = scmp.eq.s32.totalorder %s12, 0
    %p102 = por %p100, %p101
    %p103 = scmp.ne.s32.totalorder %s92, %s95
    %p104 = scmp.eq.s32.totalorder %s17, 1
    %p105 = por %p103, %p104
    %p106 = scmp.ne.s32.totalorder %s95, %s96
    %p107 = scmp.eq.s32.totalorder %s17, 0
    %p108 = por %p106, %p107
    %p109 = scmp.ne.s32.totalorder %s95, %s96
    %p110 = scmp.eq.s32.totalorder %s18, 1
    %p111 = por %p109, %p110
    %p113 = scmp.ne.s32.totalorder %s96, %s112
    %p114 = scmp.eq.s32.totalorder %s18, 0
    %p115 = por %p113, %p114
    %s116 = sadd.s32 %s19, %s20
    %p117 = scmp.lt.s32.totalorder %s116, 0
    %s118 = scalar_select %p117, %s116, 0
    %s119 = sadd.s32 %s31, %s27
    %p120 = scmp.lt.s32.totalorder %s119, 0
    %s121 = scalar_select %p120, %s119, 0
    %s122 = ssub.s32 %s118, %s121
    %p123 = scmp.eq.s32.totalorder %s122, 0
    %s125 = sadd.s32 %s124, 1
    %s126 = scalar_select %p123, %s124, %s125
    %p129 = pneg %p123
    %p130 = scmp.eq.s32.totalorder %s12, 1
    %p131 = por %p129, %p130
    %p132 = scmp.ne.s32.totalorder %s124, %s127
    %p133 = scmp.eq.s32.totalorder %s12, 0
    %p134 = por %p132, %p133
    %p135 = scmp.ne.s32.totalorder %s124, %s127
    %p136 = scmp.eq.s32.totalorder %s17, 1
    %p137 = por %p135, %p136
    %p138 = scmp.ne.s32.totalorder %s127, %s128
    %p139 = scmp.eq.s32.totalorder %s17, 0
    %p140 = por %p138, %p139
    %p141 = scmp.ne.s32.totalorder %s127, %s128
    %p142 = scmp.eq.s32.totalorder %s18, 1
    %p143 = por %p141, %p142
    %p145 = scmp.ne.s32.totalorder %s128, %s144
    %p146 = scmp.eq.s32.totalorder %s18, 0
    %p147 = por %p145, %p146
    %s148 = ssub.s32 %s19, %s31
    %p149 = scmp.eq.s32.totalorder %s148, 0
    %s151 = sadd.s32 %s150, 1
    %s152 = scalar_select %p149, %s150, %s151
    %p155 = pneg %p149
    %p156 = scmp.eq.s32.totalorder %s12, 1
    %p157 = por %p155, %p156
    %p158 = scmp.ne.s32.totalorder %s150, %s153
    %p159 = scmp.eq.s32.totalorder %s12, 0
    %p160 = por %p158, %p159
    %p161 = scmp.ne.s32.totalorder %s150, %s153
    %p162 = scmp.eq.s32.totalorder %s17, 1
    %p163 = por %p161, %p162
    %p164 = scmp.ne.s32.totalorder %s153, %s154
    %p165 = scmp.eq.s32.totalorder %s17, 0
    %p166 = por %p164, %p165
    %p167 = scmp.ne.s32.totalorder %s153, %s154
    %p168 = scmp.eq.s32.totalorder %s18, 1
    %p169 = por %p167, %p168
    %p171 = scmp.ne.s32.totalorder %s154, %s170
    %p172 = scmp.eq.s32.totalorder %s18, 0
    %p173 = por %p171, %p172
    %s174 = ssub.s32 %s19, %s31
    %p175 = scmp.eq.s32.totalorder %s174, 0
    %s177 = sadd.s32 %s176, 1
    %s178 = scalar_select %p175, %s176, %s177
    %p181 = pneg %p175
    %p182 = scmp.eq.s32.totalorder %s12, 1
    %p183 = por %p181, %p182
    %p184 = scmp.ne.s32.totalorder %s176, %s179
    %p185 = scmp.eq.s32.totalorder %s12, 0
    %p186 = por %p184, %p185
    %p187 = scmp.ne.s32.totalorder %s176, %s179
    %p188 = scmp.eq.s32.totalorder %s17, 1
    %p189 = por %p187, %p188
    %p190 = scmp.ne.s32.totalorder %s179, %s180
    %p191 = scmp.eq.s32.totalorder %s17, 0
    %p192 = por %p190, %p191
    %p193 = scmp.ne.s32.totalorder %s179, %s180
    %p194 = scmp.eq.s32.totalorder %s18, 1
    %p195 = por %p193, %p194
    %p197 = scmp.ne.s32.totalorder %s180, %s196
    %p198 = scmp.eq.s32.totalorder %s18, 0
    %p199 = por %p197, %p198
    %p200 = scmp.le.s32.totalorder 1, %s12
    %p201 = scmp.lt.s32.totalorder %s12, 3
    %p202 = pnand %p200, %p201
    %p203 = pneg %p202
    // Predicated region
    $region9: #{likelihood_loss.1} parent=5 // pred_check
      _
    $region10: #{likelihood_loss.1} parent=5 // pred_check_branch
      %205 = sbr.rel (%p202) target = $region12
    $region11: #{likelihood_loss.1} parent=5 // pred_region
      %s206 = ssub.s32 %s12, 1
    $region12: #{likelihood_loss.1} parent=5 // pred_fallthru
      _
    %p207 = scmp.lt.s32.totalorder %s12, 2
    // Predicated region
    $region13: #{likelihood_loss.1} parent=5 // pred_check
      %p208 = pneg %p207
    $region14: #{likelihood_loss.1} parent=5 // pred_check_branch
      %210 = sbr.rel (%p208) target = $region16
    $region15: #{likelihood_loss.1} parent=5 // pred_region
      // Predicated region
      $region17: #{likelihood_loss.1} parent=15 // pred_check
        %p211 = pneg %p46
      $region18: #{likelihood_loss.1} parent=15 // pred_check_branch
        %213 = sbr.rel (%p211) target = $region20
      $region19: #{likelihood_loss.1} parent=15 // pred_region
        %s214 = sadd.s32 %s19, %s20
        %p215 = scmp.lt.s32.totalorder %s214, 1
        %s216 = scalar_select %p215, %s214, 1
        %s217 = smul.addr %s216, 4
        %s218 = scalar_lea.vmem %s0, %s217
        %s219 = sadd.s32 %s19, %s20
      $region20: #{likelihood_loss.1} parent=15 // pred_fallthru
        _
      // Predicated region
      $region21: #{likelihood_loss.1} parent=15 // pred_check
        %p220 = pneg %p74
      $region22: #{likelihood_loss.1} parent=15 // pred_check_branch
        %222 = sbr.rel (%p220) target = $region24
      $region23: #{likelihood_loss.1} parent=15 // pred_region
        %s223 = sadd.s32 %s19, %s20
        %p224 = scmp.lt.s32.totalorder %s223, 1
        %s225 = scalar_select %p224, %s223, 1
        %s226 = smul.addr %s225, 4
        %s227 = scalar_lea.vmem %s1, %s226
        %s228 = sadd.s32 %s19, %s20
      $region24: #{likelihood_loss.1} parent=15 // pred_fallthru
        _
      // Predicated region
      $region25: #{likelihood_loss.1} parent=15 // pred_check
        %p229 = pneg %p102
      $region26: #{likelihood_loss.1} parent=15 // pred_check_branch
        %231 = sbr.rel (%p229) target = $region28
      $region27: #{likelihood_loss.1} parent=15 // pred_region
        %s232 = sadd.s32 %s19, %s20
        %p233 = scmp.lt.s32.totalorder %s232, 1
        %s234 = scalar_select %p233, %s232, 1
        %s235 = scalar_lea.vmem %s2, %s234
        %s236 = sadd.s32 %s19, %s20
      $region28: #{likelihood_loss.1} parent=15 // pred_fallthru
        _
      // Predicated region
      $region29: #{likelihood_loss.1} parent=15 // pred_check
        %p237 = pneg %p134
      $region30: #{likelihood_loss.1} parent=15 // pred_check_branch
        %239 = sbr.rel (%p237) target = $region32
      $region31: #{likelihood_loss.1} parent=15 // pred_region
        %s240 = sadd.s32 %s19, %s20
        %p241 = scmp.lt.s32.totalorder %s240, 0
        %s242 = scalar_select %p241, %s240, 0
        %s243 = smul.u32 16, %s242
        %p244 = scmp.lt.s32.totalorder %s243, 15
        %s245 = scalar_select %p244, %s243, 15
        %s246 = smul.addr %s245, 8
        %s247 = scalar_lea.vmem %s3, %s246
        %s248 = sadd.s32 %s19, %s20
        %p249 = scmp.lt.s32.totalorder %s248, 0
        %s250 = scalar_select %p249, %s248, 0
        %s251 = smul.u32 16, %s250
      $region32: #{likelihood_loss.1} parent=15 // pred_fallthru
        _
    $region16: #{likelihood_loss.1} parent=5 // pred_fallthru
      _
    %p252 = scmp.le.s32.totalorder 1, %s12
    %p253 = scmp.lt.s32.totalorder %s12, 3
    %p254 = pnand %p252, %p253
    %p255 = pneg %p254
    // Predicated region
    $region33: #{likelihood_loss.1} parent=5 // pred_check
      _
    $region34: #{likelihood_loss.1} parent=5 // pred_check_branch
      %257 = sbr.rel (%p254) target = $region36
    $region35: #{likelihood_loss.1} parent=5 // pred_region
      %s258 = ssub.s32 %s12, 1
      %s259 = sadd.s32 %s21, %s22
      %p260 = scmp.lt.s32.totalorder %s259, 1
      %s261 = scalar_select %p260, %s259, 1
      %s262 = smul.addr %s261, 4
      %s263 = scalar_lea.vmem %s0, %s262
      %p264 = pneg %p52
      %p265 = pneg %p49
      %s266 = sadd.s32 %s21, %s22
      %p267 = scmp.lt.s32.totalorder %s266, 1
      %s268 = scalar_select %p267, %s266, 1
      %s269 = smul.addr %s268, 4
      %s270 = scalar_lea.vmem %s1, %s269
      %p271 = pneg %p80
      %p272 = pneg %p77
      %s273 = sadd.s32 %s21, %s22
      %p274 = scmp.lt.s32.totalorder %s273, 1
      %s275 = scalar_select %p274, %s273, 1
      %s276 = scalar_lea.vmem %s2, %s275
      %p277 = pneg %p108
      %p278 = pneg %p105
      %s279 = sadd.s32 %s21, %s22
      %p280 = scmp.lt.s32.totalorder %s279, 0
      %s281 = scalar_select %p280, %s279, 0
      %s282 = smul.u32 16, %s281
      %p283 = scmp.lt.s32.totalorder %s282, 15
      %s284 = scalar_select %p283, %s282, 15
      %s285 = smul.addr %s284, 8
      %s286 = scalar_lea.vmem %s3, %s285
      %p287 = pneg %p140
      %p288 = pneg %p137
      %p289 = pneg %p166
      %p290 = pneg %p163
      %p291 = scmp.lt.s32.totalorder %s21, 1
      %s292 = scalar_select %p291, %s21, 1
      %s293 = scalar_lea.vmem %s4, %s292
      %p294 = pneg %p192
      %p295 = pneg %p189
      %p296 = scmp.lt.s32.totalorder %s21, 1
      %s297 = scalar_select %p296, %s21, 1
      %s298 = scalar_lea.vmem %s5, %s297
      %s299 = sadd.s32 %s21, %s22
      %p300 = scmp.lt.s32.totalorder %s299, 1
      %s301 = scalar_select %p300, %s299, 1
      %s302 = smul.addr %s301, 4
      %s303 = scalar_lea.vmem %s0, %s302
      %s304 = sadd.s32 %s21, %s22
      %s305 = sadd.s32 %s21, %s22
      %p306 = scmp.lt.s32.totalorder %s305, 1
      %s307 = scalar_select %p306, %s305, 1
      %s308 = smul.addr %s307, 4
      %s309 = scalar_lea.vmem %s1, %s308
      %s310 = sadd.s32 %s21, %s22
      %s311 = sadd.s32 %s21, %s22
      %p312 = scmp.lt.s32.totalorder %s311, 1
      %s313 = scalar_select %p312, %s311, 1
      %s314 = scalar_lea.vmem %s2, %s313
      %s315 = sadd.s32 %s21, %s22
      %s316 = sadd.s32 %s21, %s22
      %p317 = scmp.lt.s32.totalorder %s316, 0
      %s318 = scalar_select %p317, %s316, 0
      %s319 = smul.u32 16, %s318
      %p320 = scmp.lt.s32.totalorder %s319, 15
      %s321 = scalar_select %p320, %s319, 15
      %s322 = smul.addr %s321, 8
      %s323 = scalar_lea.vmem %s3, %s322
      %s324 = sadd.s32 %s21, %s22
      %p325 = scmp.lt.s32.totalorder %s324, 0
      %s326 = scalar_select %p325, %s324, 0
      %s327 = smul.u32 16, %s326
      %p328 = scmp.lt.s32.totalorder %s21, 1
      %s329 = scalar_select %p328, %s21, 1
      %s330 = scalar_lea.vmem %s4, %s329
      %p331 = scmp.lt.s32.totalorder %s21, 1
      %s332 = scalar_select %p331, %s21, 1
      %s333 = scalar_lea.vmem %s5, %s332
      %p334 = scmp.eq.s32.totalorder %s22, 0
      // Predicated region
      $region37: #{likelihood_loss.1} parent=35 // pred_check
        %p335 = pneg %p334
      $region38: #{likelihood_loss.1} parent=35 // pred_check_branch
        %337 = sbr.rel (%p335) target = $region40
      $region39: #{likelihood_loss.1} parent=35 // pred_region
        %338 = vst [vmem:[#allocation2] sm:$0x7] 0.0
        %339 = vst [vmem:[#allocation3] sm:$0x1] 0.0
        %vm340 = vcmask 523264
        %341 = vst.msk [vmem:[#allocation4] sm:$0xff] %vm340, 0.0
        %342 = vst.msk [vmem:[#allocation4 + $0x8] sm:$0xff] %vm340, 0.0
        %343 = vst.msk [vmem:[#allocation4 + $0x10] sm:$0xff] %vm340, 0.0
        %344 = vst.msk [vmem:[#allocation4 + $0x18] sm:$0xff] %vm340, 0.0
        %345 = vst.msk [vmem:[#allocation4 + $0x20] sm:$0xff] %vm340, 0.0
        %346 = vst.msk [vmem:[#allocation4 + $0x28] sm:$0xff] %vm340, 0.0
        %347 = vst.msk [vmem:[#allocation4 + $0x30] sm:$0xff] %vm340, 0.0
        %348 = vst.msk [vmem:[#allocation4 + $0x38] sm:$0xff] %vm340, 0.0
        %349 = vst.msk [vmem:[#allocation4 + $0x40] sm:$0xff] %vm340, 0.0
        %350 = vst.msk [vmem:[#allocation4 + $0x48] sm:$0xff] %vm340, 0.0
        %351 = vst.msk [vmem:[#allocation4 + $0x50] sm:$0xff] %vm340, 0.0
        %352 = vst.msk [vmem:[#allocation4 + $0x58] sm:$0xff] %vm340, 0.0
        %353 = vst.msk [vmem:[#allocation4 + $0x60] sm:$0xff] %vm340, 0.0
        %354 = vst.msk [vmem:[#allocation4 + $0x68] sm:$0xff] %vm340, 0.0
        %355 = vst.msk [vmem:[#allocation4 + $0x70] sm:$0xff] %vm340, 0.0
        %356 = vst.msk [vmem:[#allocation4 + $0x78] sm:$0xff] %vm340, 0.0
      $region40: #{likelihood_loss.1} parent=35 // pred_fallthru
        _
      %v357 = vld [vmem:[%s303] sm:$0x7]
      %v358 = vld [vmem:[%s309] sm:$0x7]
      %v359 = vld [vmem:[%s314] sm:$0x1]
      %v360 = vrcp.pop %v359
      %v361 = vsub.f32 %v357, %v358
      %v363 = vlaneseq
      %v364 = vshrl.u32 %v363, 7
      %v365 = vsub.s32 0, %v364
      %v366 = vrot.slane %v360, %v365
      %v368 = vmul.f32 %v361, %v366
      %v369 = vld [vmem:[#allocation2] sm:$0x7]
      %v370 = vmul.f32 %v368, %v368
      %v371 = vadd.f32 %v369, %v370
      %372 = vst [vmem:[#allocation2] sm:$0x7] %v371
      %v373 = vld [vmem:[#allocation3] sm:$0x1]
      %v374 = vlog2.pop %v359
      %v375 = vmul.f32 %v374, 0.6931472
      %v376 = vadd.f32 %v373, %v375
      %377 = vst [vmem:[#allocation3] sm:$0x1] %v376
      %v378 = vld [vmem:[%s323] sm:$0xff]
      %v379 = vld [vmem:[%s323 + $0x8] sm:$0xff]
      %v380 = vld [vmem:[%s323 + $0x10] sm:$0xff]
      %v381 = vld [vmem:[%s323 + $0x18] sm:$0xff]
      %v382 = vld [vmem:[%s323 + $0x20] sm:$0xff]
      %v383 = vld [vmem:[%s323 + $0x28] sm:$0xff]
      %v384 = vld [vmem:[%s323 + $0x30] sm:$0xff]
      %v385 = vld [vmem:[%s323 + $0x38] sm:$0xff]
      %v386 = vld [vmem:[%s323 + $0x40] sm:$0xff]
      %v387 = vld [vmem:[%s323 + $0x48] sm:$0xff]
      %v388 = vld [vmem:[%s323 + $0x50] sm:$0xff]
      %v389 = vld [vmem:[%s323 + $0x58] sm:$0xff]
      %v390 = vld [vmem:[%s323 + $0x60] sm:$0xff]
      %v391 = vld [vmem:[%s323 + $0x68] sm:$0xff]
      %v392 = vld [vmem:[%s323 + $0x70] sm:$0xff]
      %v393 = vld [vmem:[%s323 + $0x78] sm:$0xff]
      %s394 = sadd.s32 %s21, %s22
      %s395 = smul.u32 %s394, 128
      %s396 = sadd.s32 %s395, 128
      %p397 = scmp.le.s32.totalorder %s396, 128
      // Predicated region
      $region41: #{likelihood_loss.1} parent=35 // pred_check
        %p398 = pneg %p397
      $region42: #{likelihood_loss.1} parent=35 // pred_check_branch
        %400 = sbr.rel (%p398) target = $region44
      $region43: #{likelihood_loss.1} parent=35 // pred_region
        %v401 = vld [vmem:[#allocation4] sm:$0xff]
        %v402 = vld [vmem:[#allocation4 + $0x8] sm:$0xff]
        %v403 = vld [vmem:[#allocation4 + $0x10] sm:$0xff]
        %v404 = vld [vmem:[#allocation4 + $0x18] sm:$0xff]
        %v405 = vld [vmem:[#allocation4 + $0x20] sm:$0xff]
        %v406 = vld [vmem:[#allocation4 + $0x28] sm:$0xff]
        %v407 = vld [vmem:[#allocation4 + $0x30] sm:$0xff]
        %v408 = vld [vmem:[#allocation4 + $0x38] sm:$0xff]
        %v409 = vld [vmem:[#allocation4 + $0x40] sm:$0xff]
        %v410 = vld [vmem:[#allocation4 + $0x48] sm:$0xff]
        %v411 = vld [vmem:[#allocation4 + $0x50] sm:$0xff]
        %v412 = vld [vmem:[#allocation4 + $0x58] sm:$0xff]
        %v413 = vld [vmem:[#allocation4 + $0x60] sm:$0xff]
        %v414 = vld [vmem:[#allocation4 + $0x68] sm:$0xff]
        %v415 = vld [vmem:[#allocation4 + $0x70] sm:$0xff]
        %v416 = vld [vmem:[#allocation4 + $0x78] sm:$0xff]
        %v417 = vadd.f32 %v401, %v378
        %v418 = vadd.f32 %v402, %v379
        %v419 = vadd.f32 %v403, %v380
        %v420 = vadd.f32 %v404, %v381
        %v421 = vadd.f32 %v405, %v382
        %v422 = vadd.f32 %v406, %v383
        %v423 = vadd.f32 %v407, %v384
        %v424 = vadd.f32 %v408, %v385
        %v425 = vadd.f32 %v409, %v386
        %v426 = vadd.f32 %v410, %v387
        %v427 = vadd.f32 %v411, %v388
        %v428 = vadd.f32 %v412, %v389
        %v429 = vadd.f32 %v413, %v390
        %v430 = vadd.f32 %v414, %v391
        %v431 = vadd.f32 %v415, %v392
        %v432 = vadd.f32 %v416, %v393
        %vm433 = vcmask 523264
        %434 = vst.msk [vmem:[#allocation4] sm:$0xff] %vm433, %v417
        %435 = vst.msk [vmem:[#allocation4 + $0x8] sm:$0xff] %vm433, %v418
        %436 = vst.msk [vmem:[#allocation4 + $0x10] sm:$0xff] %vm433, %v419
        %437 = vst.msk [vmem:[#allocation4 + $0x18] sm:$0xff] %vm433, %v420
        %438 = vst.msk [vmem:[#allocation4 + $0x20] sm:$0xff] %vm433, %v421
        %439 = vst.msk [vmem:[#allocation4 + $0x28] sm:$0xff] %vm433, %v422
        %440 = vst.msk [vmem:[#allocation4 + $0x30] sm:$0xff] %vm433, %v423
        %441 = vst.msk [vmem:[#allocation4 + $0x38] sm:$0xff] %vm433, %v424
        %442 = vst.msk [vmem:[#allocation4 + $0x40] sm:$0xff] %vm433, %v425
        %443 = vst.msk [vmem:[#allocation4 + $0x48] sm:$0xff] %vm433, %v426
        %444 = vst.msk [vmem:[#allocation4 + $0x50] sm:$0xff] %vm433, %v427
        %445 = vst.msk [vmem:[#allocation4 + $0x58] sm:$0xff] %vm433, %v428
        %446 = vst.msk [vmem:[#allocation4 + $0x60] sm:$0xff] %vm433, %v429
        %447 = vst.msk [vmem:[#allocation4 + $0x68] sm:$0xff] %vm433, %v430
        %448 = vst.msk [vmem:[#allocation4 + $0x70] sm:$0xff] %vm433, %v431
        %449 = vst.msk [vmem:[#allocation4 + $0x78] sm:$0xff] %vm433, %v432
      $region44: #{likelihood_loss.1} parent=35 // pred_fallthru
        _
      %p450 = scmp.gt.s32.totalorder %s396, 128
      // Predicated region
      $region45: #{likelihood_loss.1} parent=35 // pred_check
        %p451 = pneg %p450
      $region46: #{likelihood_loss.1} parent=35 // pred_check_branch
        %453 = sbr.rel (%p451) target = $region48
      $region47: #{likelihood_loss.1} parent=35 // pred_region
        %v454 = vlaneseq
        %v455 = vshrl.u32 %v454, 7
        %v456 = vadd.s32 %v455, 8
        %v457 = vadd.s32 %v455, 16
        %v458 = vadd.s32 %v455, 24
        %v459 = vadd.s32 %v455, 32
        %v460 = vadd.s32 %v455, 40
        %v461 = vadd.s32 %v455, 48
        %v462 = vadd.s32 %v455, 56
        %v463 = vadd.s32 %v455, 64
        %v464 = vadd.s32 %v455, 72
        %v465 = vadd.s32 %v455, 80
        %v466 = vadd.s32 %v455, 88
        %v467 = vadd.s32 %v455, 96
        %v468 = vadd.s32 %v455, 104
        %v469 = vadd.s32 %v455, 112
        %v470 = vadd.s32 %v455, 120
        %v471 = vstv %s395
        %v472 = vadd.s32 %v455, %v471
        %v473 = vadd.s32 %v456, %v471
        %v474 = vadd.s32 %v457, %v471
        %v475 = vadd.s32 %v458, %v471
        %v476 = vadd.s32 %v459, %v471
        %v477 = vadd.s32 %v460, %v471
        %v478 = vadd.s32 %v461, %v471
        %v479 = vadd.s32 %v462, %v471
        %v480 = vadd.s32 %v463, %v471
        %v481 = vadd.s32 %v464, %v471
        %v482 = vadd.s32 %v465, %v471
        %v483 = vadd.s32 %v466, %v471
        %v484 = vadd.s32 %v467, %v471
        %v485 = vadd.s32 %v468, %v471
        %v486 = vadd.s32 %v469, %v471
        %v487 = vadd.s32 %v470, %v471
        %v488 = vld [vmem:[#allocation4] sm:$0xff]
        %v489 = vld [vmem:[#allocation4 + $0x8] sm:$0xff]
        %v490 = vld [vmem:[#allocation4 + $0x10] sm:$0xff]
        %v491 = vld [vmem:[#allocation4 + $0x18] sm:$0xff]
        %v492 = vld [vmem:[#allocation4 + $0x20] sm:$0xff]
        %v493 = vld [vmem:[#allocation4 + $0x28] sm:$0xff]
        %v494 = vld [vmem:[#allocation4 + $0x30] sm:$0xff]
        %v495 = vld [vmem:[#allocation4 + $0x38] sm:$0xff]
        %v496 = vld [vmem:[#allocation4 + $0x40] sm:$0xff]
        %v497 = vld [vmem:[#allocation4 + $0x48] sm:$0xff]
        %v498 = vld [vmem:[#allocation4 + $0x50] sm:$0xff]
        %v499 = vld [vmem:[#allocation4 + $0x58] sm:$0xff]
        %v500 = vld [vmem:[#allocation4 + $0x60] sm:$0xff]
        %v501 = vld [vmem:[#allocation4 + $0x68] sm:$0xff]
        %v502 = vld [vmem:[#allocation4 + $0x70] sm:$0xff]
        %v503 = vld [vmem:[#allocation4 + $0x78] sm:$0xff]
        %vm504 = vcmp.lt.s32.totalorder %v472, 128
        %vm505 = vcmp.lt.s32.totalorder %v473, 128
        %vm506 = vcmp.lt.s32.totalorder %v474, 128
        %vm507 = vcmp.lt.s32.totalorder %v475, 128
        %vm508 = vcmp.lt.s32.totalorder %v476, 128
        %vm509 = vcmp.lt.s32.totalorder %v477, 128
        %vm510 = vcmp.lt.s32.totalorder %v478, 128
        %vm511 = vcmp.lt.s32.totalorder %v479, 128
        %vm512 = vcmp.lt.s32.totalorder %v480, 128
        %vm513 = vcmp.lt.s32.totalorder %v481, 128
        %vm514 = vcmp.lt.s32.totalorder %v482, 128
        %vm515 = vcmp.lt.s32.totalorder %v483, 128
        %vm516 = vcmp.lt.s32.totalorder %v484, 128
        %vm517 = vcmp.lt.s32.totalorder %v485, 128
        %vm518 = vcmp.lt.s32.totalorder %v486, 128
        %vm519 = vcmp.lt.s32.totalorder %v487, 128
        %v520 = vsel %vm504, %v378, 0.0
        %v521 = vsel %vm505, %v379, 0.0
        %v522 = vsel %vm506, %v380, 0.0
        %v523 = vsel %vm507, %v381, 0.0
        %v524 = vsel %vm508, %v382, 0.0
        %v525 = vsel %vm509, %v383, 0.0
        %v526 = vsel %vm510, %v384, 0.0
        %v527 = vsel %vm511, %v385, 0.0
        %v528 = vsel %vm512, %v386, 0.0
        %v529 = vsel %vm513, %v387, 0.0
        %v530 = vsel %vm514, %v388, 0.0
        %v531 = vsel %vm515, %v389, 0.0
        %v532 = vsel %vm516, %v390, 0.0
        %v533 = vsel %vm517, %v391, 0.0
        %v534 = vsel %vm518, %v392, 0.0
        %v535 = vsel %vm519, %v393, 0.0
        %v536 = vadd.f32 %v488, %v520
        %v537 = vadd.f32 %v489, %v521
        %v538 = vadd.f32 %v490, %v522
        %v539 = vadd.f32 %v491, %v523
        %v540 = vadd.f32 %v492, %v524
        %v541 = vadd.f32 %v493, %v525
        %v542 = vadd.f32 %v494, %v526
        %v543 = vadd.f32 %v495, %v527
        %v544 = vadd.f32 %v496, %v528
        %v545 = vadd.f32 %v497, %v529
        %v546 = vadd.f32 %v498, %v530
        %v547 = vadd.f32 %v499, %v531
        %v548 = vadd.f32 %v500, %v532
        %v549 = vadd.f32 %v501, %v533
        %v550 = vadd.f32 %v502, %v534
        %v551 = vadd.f32 %v503, %v535
        %vm552 = vcmask 523264
        %553 = vst.msk [vmem:[#allocation4] sm:$0xff] %vm552, %v536
        %554 = vst.msk [vmem:[#allocation4 + $0x8] sm:$0xff] %vm552, %v537
        %555 = vst.msk [vmem:[#allocation4 + $0x10] sm:$0xff] %vm552, %v538
        %556 = vst.msk [vmem:[#allocation4 + $0x18] sm:$0xff] %vm552, %v539
        %557 = vst.msk [vmem:[#allocation4 + $0x20] sm:$0xff] %vm552, %v540
        %558 = vst.msk [vmem:[#allocation4 + $0x28] sm:$0xff] %vm552, %v541
        %559 = vst.msk [vmem:[#allocation4 + $0x30] sm:$0xff] %vm552, %v542
        %560 = vst.msk [vmem:[#allocation4 + $0x38] sm:$0xff] %vm552, %v543
        %561 = vst.msk [vmem:[#allocation4 + $0x40] sm:$0xff] %vm552, %v544
        %562 = vst.msk [vmem:[#allocation4 + $0x48] sm:$0xff] %vm552, %v545
        %563 = vst.msk [vmem:[#allocation4 + $0x50] sm:$0xff] %vm552, %v546
        %564 = vst.msk [vmem:[#allocation4 + $0x58] sm:$0xff] %vm552, %v547
        %565 = vst.msk [vmem:[#allocation4 + $0x60] sm:$0xff] %vm552, %v548
        %566 = vst.msk [vmem:[#allocation4 + $0x68] sm:$0xff] %vm552, %v549
        %567 = vst.msk [vmem:[#allocation4 + $0x70] sm:$0xff] %vm552, %v550
        %568 = vst.msk [vmem:[#allocation4 + $0x78] sm:$0xff] %vm552, %v551
      $region48: #{likelihood_loss.1} parent=35 // pred_fallthru
        _
      // Predicated region
      $region49: #{likelihood_loss.1} parent=35 // pred_check
        %p569 = pneg %p334
      $region50: #{likelihood_loss.1} parent=35 // pred_check_branch
        %571 = sbr.rel (%p569) target = $region52
      $region51: #{likelihood_loss.1} parent=35 // pred_region
        %v572 = vld [vmem:[#allocation2] sm:$0x7]
        %vm573 = vcmask 1042432
        %v574 = vsel %vm573, %v572, 0.0
        %575 = vadd.xlane.f32.xlu0 %v574
        %v576 = vpop.xlane.xlu0 %575
        %v577 = vrot.slane %v576, 4
        %v578 = vadd.f32 %v576, %v577
        %v579 = vrot.slane %v578, 2
        %v580 = vadd.f32 %v578, %v579
        %v581 = vrot.slane %v580, 1
        %v582 = vadd.f32 %v580, %v581
        %s583 = vtos %v582
        %s584 = smul.f32 %s583, 0.0026041667
        %s585 = smul.f32 %s584, 0.5
        %v586 = vld [vmem:[#allocation3] sm:$0x1]
        %vm587 = vcmask 1040384
        %v588 = vsel %vm587, %v586, 0.0
        %589 = vadd.xlane.f32.xlu0 %v588
        %v590 = vpop.xlane.xlu0 %589
        %v591 = vrot.slane %v590, 4
        %v592 = vadd.f32 %v590, %v591
        %v593 = vrot.slane %v592, 2
        %v594 = vadd.f32 %v592, %v593
        %v595 = vrot.slane %v594, 1
        %v596 = vadd.f32 %v594, %v595
        %s597 = vtos %v596
        %s598 = smul.f32 %s597, 0.0078125
        %s599 = sadd.f32 %s585, %s598
        %v600 = vld [vmem:[#allocation4] sm:$0xff]
        %v601 = vld [vmem:[#allocation4 + $0x8] sm:$0xff]
        %v602 = vld [vmem:[#allocation4 + $0x10] sm:$0xff]
        %v603 = vld [vmem:[#allocation4 + $0x18] sm:$0xff]
        %v604 = vld [vmem:[#allocation4 + $0x20] sm:$0xff]
        %v605 = vld [vmem:[#allocation4 + $0x28] sm:$0xff]
        %v606 = vld [vmem:[#allocation4 + $0x30] sm:$0xff]
        %v607 = vld [vmem:[#allocation4 + $0x38] sm:$0xff]
        %v608 = vld [vmem:[#allocation4 + $0x40] sm:$0xff]
        %v609 = vld [vmem:[#allocation4 + $0x48] sm:$0xff]
        %v610 = vld [vmem:[#allocation4 + $0x50] sm:$0xff]
        %v611 = vld [vmem:[#allocation4 + $0x58] sm:$0xff]
        %v612 = vld [vmem:[#allocation4 + $0x60] sm:$0xff]
        %v613 = vld [vmem:[#allocation4 + $0x68] sm:$0xff]
        %v614 = vld [vmem:[#allocation4 + $0x70] sm:$0xff]
        %v615 = vld [vmem:[#allocation4 + $0x78] sm:$0xff]
        %vm616 = vcmask 523264
        %v617 = vsel %vm616, %v600, 0.0
        %v618 = vsel %vm616, %v601, 0.0
        %v619 = vadd.f32 %v617, %v618
        %v620 = vsel %vm616, %v602, 0.0
        %v621 = vadd.f32 %v619, %v620
        %v622 = vsel %vm616, %v603, 0.0
        %v623 = vadd.f32 %v621, %v622
        %v624 = vsel %vm616, %v604, 0.0
        %v625 = vadd.f32 %v623, %v624
        %v626 = vsel %vm616, %v605, 0.0
        %v627 = vadd.f32 %v625, %v626
        %v628 = vsel %vm616, %v606, 0.0
        %v629 = vadd.f32 %v627, %v628
        %v630 = vsel %vm616, %v607, 0.0
        %v631 = vadd.f32 %v629, %v630
        %v632 = vsel %vm616, %v608, 0.0
        %v633 = vadd.f32 %v631, %v632
        %v634 = vsel %vm616, %v609, 0.0
        %v635 = vadd.f32 %v633, %v634
        %v636 = vsel %vm616, %v610, 0.0
        %v637 = vadd.f32 %v635, %v636
        %v638 = vsel %vm616, %v611, 0.0
        %v639 = vadd.f32 %v637, %v638
        %v640 = vsel %vm616, %v612, 0.0
        %v641 = vadd.f32 %v639, %v640
        %v642 = vsel %vm616, %v613, 0.0
        %v643 = vadd.f32 %v641, %v642
        %v644 = vsel %vm616, %v614, 0.0
        %v645 = vadd.f32 %v643, %v644
        %v646 = vsel %vm616, %v615, 0.0
        %v647 = vadd.f32 %v645, %v646
        %648 = vadd.xlane.f32.xlu0 %v647
        %v649 = vpop.xlane.xlu0 %648
        %v650 = vrot.slane %v649, 4
        %v651 = vadd.f32 %v649, %v650
        %v652 = vrot.slane %v651, 2
        %v653 = vadd.f32 %v651, %v652
        %v654 = vrot.slane %v653, 1
        %v655 = vadd.f32 %v653, %v654
        %s656 = vtos %v655
        %s657 = smul.f32 %s656, 0.01
        %s658 = smul.f32 %s657, 0.00012207031
        %v659 = vstv %s599
        %vm660 = vcmask 0
        %661 = vst.msk [vmem:[%s330] sm:$0x1] %vm660, %v659
        %v662 = vstv %s658
        %663 = vst.msk [vmem:[%s333] sm:$0x1] %vm660, %v662
      $region52: #{likelihood_loss.1} parent=35 // pred_fallthru
        _
      %p664 = scmp.lt.s32.totalorder %s21, 1
      %s665 = scalar_select %p664, %s21, 1
      %s666 = scalar_lea.vmem %s4, %s665
      %p667 = scmp.lt.s32.totalorder %s21, 1
      %s668 = scalar_select %p667, %s21, 1
      %s669 = scalar_lea.vmem %s5, %s668
      // Predicated region
      $region53: #{likelihood_loss.1} parent=35 // pred_check
        %p670 = pneg %p163
      $region54: #{likelihood_loss.1} parent=35 // pred_check_branch
        %672 = sbr.rel (%p670) target = $region56
      $region55: #{likelihood_loss.1} parent=35 // pred_region
        _
      $region56: #{likelihood_loss.1} parent=35 // pred_fallthru
        _
      // Predicated region
      $region57: #{likelihood_loss.1} parent=35 // pred_check
        %p673 = pneg %p189
      $region58: #{likelihood_loss.1} parent=35 // pred_check_branch
        %675 = sbr.rel (%p673) target = $region60
      $region59: #{likelihood_loss.1} parent=35 // pred_region
        _
      $region60: #{likelihood_loss.1} parent=35 // pred_fallthru
        _
    $region36: #{likelihood_loss.1} parent=5 // pred_fallthru
      _
    %p676 = scmp.le.s32.totalorder 2, %s12
    // Predicated region
    $region61: #{likelihood_loss.1} parent=5 // pred_check
      %p677 = pneg %p676
    $region62: #{likelihood_loss.1} parent=5 // pred_check_branch
      %679 = sbr.rel (%p677) target = $region64
    $region63: #{likelihood_loss.1} parent=5 // pred_region
      %s680 = ssub.s32 %s12, 2
      // Predicated region
      $region65: #{likelihood_loss.1} parent=63 // pred_check
        %p681 = pneg %p169
      $region66: #{likelihood_loss.1} parent=63 // pred_check_branch
        %683 = sbr.rel (%p681) target = $region68
      $region67: #{likelihood_loss.1} parent=63 // pred_region
        %p684 = scmp.lt.s32.totalorder %s23, 1
        %s685 = scalar_select %p684, %s23, 1
        %s686 = scalar_lea.vmem %s4, %s685
      $region68: #{likelihood_loss.1} parent=63 // pred_fallthru
        _
      // Predicated region
      $region69: #{likelihood_loss.1} parent=63 // pred_check
        %p687 = pneg %p195
      $region70: #{likelihood_loss.1} parent=63 // pred_check_branch
        %689 = sbr.rel (%p687) target = $region72
      $region71: #{likelihood_loss.1} parent=63 // pred_region
        %p690 = scmp.lt.s32.totalorder %s23, 1
        %s691 = scalar_select %p690, %s23, 1
        %s692 = scalar_lea.vmem %s5, %s691
      $region72: #{likelihood_loss.1} parent=63 // pred_fallthru
        _
    $region64: #{likelihood_loss.1} parent=5 // pred_fallthru
      _
  $region6: #{likelihood_loss.1} parent=0 // loop_footer
    %s16 = sadd.s32 1, %s12
  $region7: #{likelihood_loss.1} parent=0 // loop_footer_branch
    %11 = sbr.rel target = $region3
  $region8: #{likelihood_loss.1} parent=0 // loop_exit
    _

</llo_original>
